<compile_context>
chip_gen: v7x
topology: tpu7x:2x2x1
jax: 0.10.0
libtpu: 0.0.40
codegen_flags: <defaults>
</compile_context>

<pallas_src>
import numpy as np
import jax
import jax.numpy as jnp
from jax import lax
from jax.experimental import pallas as pl
from jax.experimental.pallas import tpu as pltpu

# ----------------------------------------------------------------------------
# Synthetic EDM config (mirrors the module's __init__ / cfg; no checkpoint).
# ----------------------------------------------------------------------------
RHO = 7.0          # cfg.rho
S_MIN = 0.002      # cfg.s_min
S_MAX = 80.0       # cfg.s_max
SIGMA_DATA = 10.0  # registered buffer sigma_data
# training_noise_schedule = 'uniform_t' (t passed in explicitly).

_C0 = S_MAX ** (1.0 / RHO)
_C1 = S_MIN ** (1.0 / RHO) - S_MAX ** (1.0 / RHO)
_SD2 = SIGMA_DATA * SIGMA_DATA

_LANE = 128
_TARGET_BLOCK_BYTES = 2 << 20   # ~2 MiB per operand block (RNG temporaries also
                                # occupy scoped VMEM, so stay well under the cap)
_VMEM_LIMIT = 32 << 20          # fits v7x (64 MiB VMEM/TC) as well as v5e/v6e


def _round_up(v, m):
    return (v + m - 1) // m * m


def _round_down(v, m):
    return v // m * m


# ----------------------------------------------------------------------------
# Portable in-kernel counter-based Gaussian PRNG (pure jnp/lax ops; lowers on
# Mosaic TPU and under the interpret fallback — no pltpu.prng_* primitives).
# ----------------------------------------------------------------------------
def _mix32(x):
    """'lowbias32' integer finalizer — full avalanche, 32-bit VPU ops only."""
    x = x ^ (x >> 16)
    x = x * jnp.uint32(0x7FEB352D)
    x = x ^ (x >> 15)
    x = x * jnp.uint32(0x846CA68B)
    x = x ^ (x >> 16)
    return x


def _bits_to_unit(b):
    """Top 23 bits of a uint32 -> float32 in (0, 1) (never 0, so log is safe)."""
    m = (b >> 9).astype(jnp.int32).astype(jnp.float32)
    return (m + jnp.float32(0.5)) * jnp.float32(1.0 / (1 << 23))


def _uniform_pair(shape, base, seed_u32):
    """Two independent U(0,1) arrays of `shape` from distinct counters."""
    r_i = lax.broadcasted_iota(jnp.int32, shape, 0)
    c_i = lax.broadcasted_iota(jnp.int32, shape, 1)
    idx = r_i * shape[1] + c_i + base                      # unique per element/tile
    k = idx.astype(jnp.uint32) * jnp.uint32(0x9E3779B1) + seed_u32
    b1 = _mix32(k)
    b2 = _mix32(b1 ^ jnp.uint32(0x68E31DA4))
    return _bits_to_unit(b1), _bits_to_unit(b2)


def _std_normal(rows, cols, base, seed_i32):
    """Standard-normal (rows, cols) block via Box-Muller.

    When rows % 16 == 0 the (u1,u2) pairs fill BOTH halves of the tile
    (r*cos and r*sin), halving transcendental and hash cost; the two halves
    are concatenated along the (8-aligned) sublane axis, which is cheap.
    """
    seed_u = seed_i32.astype(jnp.uint32)
    two_pi = jnp.float32(2.0 * np.pi)
    if rows % 16 == 0:
        h = rows // 2
        u1, u2 = _uniform_pair((h, cols), base, seed_u)
        r = jnp.sqrt(jnp.float32(-2.0) * jnp.log(u1))
        th = two_pi * u2
        return jnp.concatenate([r * jnp.cos(th), r * jnp.sin(th)], axis=0)
    u1, u2 = _uniform_pair((rows, cols), base, seed_u)
    r = jnp.sqrt(jnp.float32(-2.0) * jnp.log(u1))
    return r * jnp.cos(two_pi * u2)


# ----------------------------------------------------------------------------
# Kernels
# ----------------------------------------------------------------------------
def _edm_noise_kernel_dense(seed_ref, sigma_ref, x_ref, xt_ref):
    """Dense path: x viewed as (B, F//128, 128); grid = (B, row tiles).

    seed_ref : SMEM (1,) int32   pre-mixed base seed (scalar prefetch)
    sigma_ref: SMEM (B,) f32     per-batch sigma (scalar prefetch)
    x_ref    : VMEM (tile_rb, 128) input dtype (leading batch dim squeezed)
    xt_ref   : VMEM (tile_rb, 128)
    """
    rows, cols = x_ref.shape
    b = pl.program_id(0)
    tile_id = b * pl.num_programs(1) + pl.program_id(1)
    base = tile_id * (rows * cols)                 # disjoint counter range per tile
    eps = _std_normal(rows, cols, base, seed_ref[0])
    sig = sigma_ref[b]                             # scalar splat; no VMEM column
    xt_ref[...] = (x_ref[...].astype(jnp.float32) + eps * sig).astype(xt_ref.dtype)


def _edm_noise_kernel_ragged(seed_ref, sigma_ref, x_ref, xt_ref):
    """Ragged path (F % 128 != 0): x as (B, F); sigma as a small (tile_r,1) col."""
    rows, cols = x_ref.shape
    tile_id = pl.program_id(0) * pl.num_programs(1) + pl.program_id(1)
    base = tile_id * (rows * cols)
    eps = _std_normal(rows, cols, base, seed_ref[0])
    xt = x_ref[...].astype(jnp.float32) + eps * sigma_ref[...]
    xt_ref[...] = xt.astype(xt_ref.dtype)


# ----------------------------------------------------------------------------
# Wrapper
# ----------------------------------------------------------------------------
def _mix_seed_host(seed):
    """Hash-mix the user seed once on the host so sequential seeds decorrelate."""
    s = jnp.asarray(seed, jnp.uint32)
    s = s ^ (s >> 16)
    s = s * jnp.uint32(0x7FEB352D)
    s = s ^ (s >> 15)
    s = s * jnp.uint32(0x846CA68B)
    s = s ^ (s >> 16)
    return lax.bitcast_convert_type(s, jnp.int32).reshape(1)


def edm_forward(x, aatype, t, seed):
    """Pallas-backed EDM.forward(batch={'x': x, 'aatype': aatype}, t=t).

    x: [B, N, A, 3]; t: [B] float in [0,1]; aatype: [B, N] (pass-through);
    seed: int driving the in-kernel counter-based PRNG (replaces torch's
    global RNG state for randn_like).
    """
    B = x.shape[0]
    F = int(np.prod(x.shape[1:]))
    dtype = x.dtype
    itemsize = jnp.dtype(dtype).itemsize

    # Per-batch scalar math (B elements) hoisted out of the tiled hot loop.
    t32 = jnp.asarray(t, jnp.float32)
    sigma = ((_C0 + t32 * _C1) ** RHO) * SIGMA_DATA          # (B,)
    s2 = sigma * sigma
    loss_weight_t = (_SD2 + s2) / (s2 * _SD2)                # 1 / c_out(sigma)^2

    seed_arr = _mix_seed_host(seed)

    if F % _LANE == 0:
        # Lane-dense, batch-aligned view (free reshape): (B, F//128, 128).
        Rb = F // _LANE
        x_r = x.reshape(B, Rb, _LANE)
        rows_target = max(8, _TARGET_BLOCK_BYTES // (_LANE * itemsize))
        tile_rb = min(Rb, rows_target)
        if tile_rb >= 16:
            tile_rb = _round_down(tile_rb, 16)       # keep Box-Muller pairing aligned
        grid = (B, pl.cdiv(Rb, tile_rb))
        paired = (tile_rb % 16 == 0)

        out = pl.pallas_call(
            _edm_noise_kernel_dense,
            out_shape=jax.ShapeDtypeStruct((B, Rb, _LANE), dtype),
            grid_spec=pltpu.PrefetchScalarGridSpec(
                num_scalar_prefetch=2,               # seed, sigma -> SMEM
                grid=grid,
                in_specs=[
                    pl.BlockSpec((None, tile_rb, _LANE),
                                 lambda b, j, s_ref, sig_ref: (b, j, 0)),
                ],
                out_specs=pl.BlockSpec((None, tile_rb, _LANE),
                                       lambda b, j, s_ref, sig_ref: (b, j, 0)),
            ),
            compiler_params=pltpu.CompilerParams(
                dimension_semantics=("parallel", "parallel"),
                vmem_limit_bytes=_VMEM_LIMIT,
            ),
            cost_estimate=pl.CostEstimate(
                flops=20 * B * F,
                transcendentals=(2 if paired else 3) * B * F,
                bytes_accessed=2 * B * F * itemsize + 4 * B + 4,
            ),
        )(seed_arr, sigma, x_r)
        x_noised = out.reshape(x.shape)
    else:
        # Ragged F: (B, F), lane axis tiled in multiples of 128 (no padding copy).
        x_r = x.reshape(B, F)
        sigma_col = sigma.reshape(B, 1)
        tile_r = min(_round_down(B, 8), 64) if B >= 8 else B
        tile_c = min(_round_up(F, _LANE),
                     max(_LANE,
                         _round_down(_TARGET_BLOCK_BYTES // (tile_r * itemsize), _LANE)))
        grid = (pl.cdiv(B, tile_r), pl.cdiv(F, tile_c))
        paired = (tile_r % 16 == 0)

        out = pl.pallas_call(
            _edm_noise_kernel_ragged,
            out_shape=jax.ShapeDtypeStruct((B, F), dtype),
            grid_spec=pltpu.PrefetchScalarGridSpec(
                num_scalar_prefetch=1,               # seed -> SMEM
                grid=grid,
                in_specs=[
                    pl.BlockSpec((tile_r, 1), lambda i, j, s_ref: (i, 0)),      # sigma
                    pl.BlockSpec((tile_r, tile_c), lambda i, j, s_ref: (i, j)),  # x
                ],
                out_specs=pl.BlockSpec((tile_r, tile_c), lambda i, j, s_ref: (i, j)),
            ),
            compiler_params=pltpu.CompilerParams(
                dimension_semantics=("parallel", "parallel"),
                vmem_limit_bytes=_VMEM_LIMIT,
            ),
            cost_estimate=pl.CostEstimate(
                flops=20 * B * F,
                transcendentals=(2 if paired else 3) * B * F,
                bytes_accessed=2 * B * F * itemsize + 4 * B + 4,
            ),
        )(seed_arr, sigma_col, x_r)
        x_noised = out.reshape(x.shape)

    return {
        "t": t,
        "x_noised": x_noised,
        "x_target": x,
        "aatype_noised": aatype,
        "loss_weight_t": loss_weight_t,
    }


# ----------------------------------------------------------------------------
# Reference / validation helpers (numpy mirror of the torch module's math).
# ----------------------------------------------------------------------------
def _sigma_lw_ref(t):
    t = np.asarray(t, np.float64)
    u = S_MAX ** (1.0 / RHO) + t * (S_MIN ** (1.0 / RHO) - S_MAX ** (1.0 / RHO))
    sigma = (u ** RHO) * SIGMA_DATA
    var_x = SIGMA_DATA ** 2 + sigma ** 2
    c_out = sigma * SIGMA_DATA / np.sqrt(var_x)
    return sigma, 1.0 / c_out ** 2


def _check(out, x, aatype, t):
    x_np = np.asarray(x, np.float64)
    sigma, lw_ref = _sigma_lw_ref(t)

    np.testing.assert_array_equal(np.asarray(out["x_target"]), np.asarray(x))
    np.testing.assert_array_equal(np.asarray(out["aatype_noised"]), np.asarray(aatype))
    np.testing.assert_array_equal(np.asarray(out["t"]), np.asarray(t))
    np.testing.assert_allclose(np.asarray(out["loss_weight_t"], np.float64), lw_ref,
                               rtol=1e-4)

    xt = np.asarray(out["x_noised"], np.float64)
    assert out["x_noised"].dtype == x.dtype and xt.shape == x_np.shape
    assert np.all(np.isfinite(xt))
    # Noise comes from the in-kernel PRNG -> validate it statistically:
    # eps = (xt - x) / sigma_b must look standard normal (per batch element).
    eps = (xt - x_np) / sigma[:, None, None, None]
    assert abs(float(eps.mean())) < 6.0 / np.sqrt(eps.size) + 1e-3, eps.mean()
    for b in range(eps.shape[0]):
        sd = float(eps[b].std())
        assert 0.7 < sd < 1.3, (b, sd)


if __name__ == "__main__":
    key = jax.random.PRNGKey(0)

    # (N, A) configs:
    #   (8, 4)    -> F = 96   : ragged path (F % 128 != 0)
    #   (16, 8)   -> F = 384  : dense path, Rb = 3 (small tile, un-paired BM)
    #   (128, 16) -> F = 6144 : dense path, Rb = 48 (paired Box-Muller + concat)
    for (N, A) in [(8, 4), (16, 8), (128, 16)]:
        key, k_x, k_aa, k_t = jax.random.split(key, 4)
        B = 2
        x = jax.random.normal(k_x, (B, N, A, 3), dtype=jnp.float32)
        aatype = jax.random.randint(k_aa, (B, N), 0, 20, dtype=jnp.int32)
        # 'uniform_t' schedule sampled outside the kernel (like sample_timestep);
        # passed explicitly for determinism.
        t = jax.random.uniform(k_t, (B,), dtype=jnp.float32)

        out = jax.block_until_ready(edm_forward(x, aatype, t, seed=1234))
        _check(out, x, aatype, t)

        # Same seed -> bit-identical noise; different seed -> different noise.
        out2 = jax.block_until_ready(edm_forward(x, aatype, t, seed=1234))
        np.testing.assert_array_equal(np.asarray(out["x_noised"]),
                                      np.asarray(out2["x_noised"]))
        out3 = jax.block_until_ready(edm_forward(x, aatype, t, seed=999))
        assert not np.array_equal(np.asarray(out["x_noised"]),
                                  np.asarray(out3["x_noised"]))

    print("KERNEL_OK")
</pallas_src>

<mosaic_0001>
module attributes {stable_mosaic.version = 11 : i64} {
  func.func @_edm_noise_kernel_ragged(%arg0: i32, %arg1: i32, %arg2: memref<1xi32, #tpu.memory_space<smem>>, %arg3: memref<2x1xf32, #tpu.memory_space<vmem>>, %arg4: memref<2x128xf32, #tpu.memory_space<vmem>>, %arg5: memref<2x128xf32, #tpu.memory_space<vmem>>) attributes {dimension_semantics = [#tpu.dimension_semantics<parallel>, #tpu.dimension_semantics<parallel>], iteration_bounds = array<i64: 1, 1>, scalar_prefetch = 1 : i64, scratch_operands = 0 : i64, tpu.core_type = #tpu.core_type<tc>, window_params = [{transform_indices = @transform_0, window_bounds = array<i64: 2, 1>}, {transform_indices = @transform_1, window_bounds = array<i64: 2, 128>}, {transform_indices = @transform_2, window_bounds = array<i64: 2, 128>}]} {
    %c1_i32 = arith.constant 1 : i32
    %0 = arith.muli %arg0, %c1_i32 : i32
    %1 = arith.addi %0, %arg1 : i32
    %c256_i32 = arith.constant 256 : i32
    %2 = arith.muli %1, %c256_i32 : i32
    %c0 = arith.constant 0 : index
    %3 = memref.load %arg2[%c0] : memref<1xi32, #tpu.memory_space<smem>>
    %4 = tpu.iota {dimensions = array<i32: 0>} : vector<2x128xi32>
    %5 = tpu.iota {dimensions = array<i32: 1>} : vector<2x128xi32>
    %c128_i32 = arith.constant 128 : i32
    %6 = vector.broadcast %c128_i32 : i32 to vector<2x128xi32>
    %7 = arith.muli %4, %6 : vector<2x128xi32>
    %8 = arith.addi %7, %5 : vector<2x128xi32>
    %9 = vector.broadcast %2 : i32 to vector<2x128xi32>
    %10 = arith.addi %8, %9 : vector<2x128xi32>
    %c-1640531535_i32 = arith.constant -1640531535 : i32
    %11 = vector.broadcast %c-1640531535_i32 : i32 to vector<2x128xi32>
    %12 = arith.muli %10, %11 : vector<2x128xi32>
    %13 = vector.broadcast %3 : i32 to vector<2x128xi32>
    %14 = arith.addi %12, %13 : vector<2x128xi32>
    %c16_i32 = arith.constant 16 : i32
    %15 = vector.broadcast %c16_i32 : i32 to vector<2x128xi32>
    %16 = arith.shrui %14, %15 : vector<2x128xi32>
    %17 = arith.xori %14, %16 : vector<2x128xi32>
    %c2146121005_i32 = arith.constant 2146121005 : i32
    %18 = vector.broadcast %c2146121005_i32 : i32 to vector<2x128xi32>
    %19 = arith.muli %17, %18 : vector<2x128xi32>
    %c15_i32 = arith.constant 15 : i32
    %20 = vector.broadcast %c15_i32 : i32 to vector<2x128xi32>
    %21 = arith.shrui %19, %20 : vector<2x128xi32>
    %22 = arith.xori %19, %21 : vector<2x128xi32>
    %c-2073254261_i32 = arith.constant -2073254261 : i32
    %23 = vector.broadcast %c-2073254261_i32 : i32 to vector<2x128xi32>
    %24 = arith.muli %22, %23 : vector<2x128xi32>
    %c16_i32_0 = arith.constant 16 : i32
    %25 = vector.broadcast %c16_i32_0 : i32 to vector<2x128xi32>
    %26 = arith.shrui %24, %25 : vector<2x128xi32>
    %27 = arith.xori %24, %26 : vector<2x128xi32>
    %c1759714724_i32 = arith.constant 1759714724 : i32
    %28 = vector.broadcast %c1759714724_i32 : i32 to vector<2x128xi32>
    %29 = arith.xori %27, %28 : vector<2x128xi32>
    %c16_i32_1 = arith.constant 16 : i32
    %30 = vector.broadcast %c16_i32_1 : i32 to vector<2x128xi32>
    %31 = arith.shrui %29, %30 : vector<2x128xi32>
    %32 = arith.xori %29, %31 : vector<2x128xi32>
    %c2146121005_i32_2 = arith.constant 2146121005 : i32
    %33 = vector.broadcast %c2146121005_i32_2 : i32 to vector<2x128xi32>
    %34 = arith.muli %32, %33 : vector<2x128xi32>
    %c15_i32_3 = arith.constant 15 : i32
    %35 = vector.broadcast %c15_i32_3 : i32 to vector<2x128xi32>
    %36 = arith.shrui %34, %35 : vector<2x128xi32>
    %37 = arith.xori %34, %36 : vector<2x128xi32>
    %c-2073254261_i32_4 = arith.constant -2073254261 : i32
    %38 = vector.broadcast %c-2073254261_i32_4 : i32 to vector<2x128xi32>
    %39 = arith.muli %37, %38 : vector<2x128xi32>
    %c16_i32_5 = arith.constant 16 : i32
    %40 = vector.broadcast %c16_i32_5 : i32 to vector<2x128xi32>
    %41 = arith.shrui %39, %40 : vector<2x128xi32>
    %42 = arith.xori %39, %41 : vector<2x128xi32>
    %c9_i32 = arith.constant 9 : i32
    %43 = vector.broadcast %c9_i32 : i32 to vector<2x128xi32>
    %44 = arith.shrui %27, %43 : vector<2x128xi32>
    %45 = arith.sitofp %44 : vector<2x128xi32> to vector<2x128xf32>
    %cst = arith.constant 5.000000e-01 : f32
    %46 = vector.broadcast %cst : f32 to vector<2x128xf32>
    %47 = arith.addf %45, %46 : vector<2x128xf32>
    %cst_6 = arith.constant 1.1920929E-7 : f32
    %48 = vector.broadcast %cst_6 : f32 to vector<2x128xf32>
    %49 = arith.mulf %47, %48 : vector<2x128xf32>
    %c9_i32_7 = arith.constant 9 : i32
    %50 = vector.broadcast %c9_i32_7 : i32 to vector<2x128xi32>
    %51 = arith.shrui %42, %50 : vector<2x128xi32>
    %52 = arith.sitofp %51 : vector<2x128xi32> to vector<2x128xf32>
    %cst_8 = arith.constant 5.000000e-01 : f32
    %53 = vector.broadcast %cst_8 : f32 to vector<2x128xf32>
    %54 = arith.addf %52, %53 : vector<2x128xf32>
    %cst_9 = arith.constant 1.1920929E-7 : f32
    %55 = vector.broadcast %cst_9 : f32 to vector<2x128xf32>
    %56 = arith.mulf %54, %55 : vector<2x128xf32>
    %57 = math.log %49 : vector<2x128xf32>
    %cst_10 = arith.constant -2.000000e+00 : f32
    %58 = vector.broadcast %cst_10 : f32 to vector<2x128xf32>
    %59 = arith.mulf %58, %57 : vector<2x128xf32>
    %60 = math.sqrt %59 : vector<2x128xf32>
    %cst_11 = arith.constant 6.28318548 : f32
    %61 = vector.broadcast %cst_11 : f32 to vector<2x128xf32>
    %62 = arith.mulf %61, %56 : vector<2x128xf32>
    %63 = math.cos %62 : vector<2x128xf32>
    %64 = arith.mulf %60, %63 : vector<2x128xf32>
    %c0_12 = arith.constant 0 : index
    %c0_13 = arith.constant 0 : index
    %65 = vector.load %arg4[%c0_12, %c0_13] : memref<2x128xf32, #tpu.memory_space<vmem>>, vector<2x128xf32>
    %c0_14 = arith.constant 0 : index
    %c0_15 = arith.constant 0 : index
    %66 = vector.load %arg3[%c0_14, %c0_15] : memref<2x1xf32, #tpu.memory_space<vmem>>, vector<2x1xf32>
    %67 = vector.broadcast %66 : vector<2x1xf32> to vector<2x128xf32>
    %68 = arith.mulf %64, %67 : vector<2x128xf32>
    %69 = arith.addf %65, %68 : vector<2x128xf32>
    %c0_16 = arith.constant 0 : index
    %c0_17 = arith.constant 0 : index
    %70 = vector.load %arg5[%c0_16, %c0_17] : memref<2x128xf32, #tpu.memory_space<vmem>>, vector<2x128xf32>
    tpu.vector_store %arg5[%c0_16, %c0_17], %69 {strides = array<i32>} : memref<2x128xf32, #tpu.memory_space<vmem>>, vector<2x128xf32>,
    return
  }
  func.func @transform_0(%arg0: i32, %arg1: i32, %arg2: memref<1xi32, #tpu.memory_space<smem>>) -> (i32, i32) {
    %c0_i32 = arith.constant 0 : i32
    %c0_i32_0 = arith.constant 0 : i32
    return %arg0, %c0_i32 : i32, i32
  }
  func.func @transform_1(%arg0: i32, %arg1: i32, %arg2: memref<1xi32, #tpu.memory_space<smem>>) -> (i32, i32) {
    %c0_i32 = arith.constant 0 : i32
    return %arg0, %arg1 : i32, i32
  }
  func.func @transform_2(%arg0: i32, %arg1: i32, %arg2: memref<1xi32, #tpu.memory_space<smem>>) -> (i32, i32) {
    %c0_i32 = arith.constant 0 : i32
    return %arg0, %arg1 : i32, i32
  }
}

</mosaic_0001>

<llo_original>
// kernel: tpu_custom_call.1
$region0: #{tpu_custom_call.1}
  #allocation0 [shape = 'u32[]', space=smem, size = 0x4, offset = 0x4, fixed_abs, tag = 'smem constant byte address 0x4 - core index']
  #allocation1 [shape = 'u32[144,128]{1,0:T(1,128)}', space=vmem, size = 0x12000, scoped, tag = 'internal scratch']
  #allocation2 [shape = 's32[1]{0}', space=sflag, size = 0x4, scoped, tag = 'scoped memory for tpu_custom_call.1']
  #allocation3 [shape = 's32[1]{0:T(128)S(6)}', space=smem, size = 0x200, scoped, tag = 'prefetched SMEM operand 0']
  %s0 = inlined_call_operand.<no memory space> [shape: s32[1], index: 0, kind: input, shape index: {}]
  %s1 = inlined_call_operand.vmem [shape: f32[2,1], index: 1, kind: input, shape index: {}]
  %s2 = inlined_call_operand.vmem [shape: f32[2,96], index: 2, kind: input, shape index: {}]
  %s3 = inlined_call_operand.hbm [shape: f32[2,96], index: 3, kind: output, shape index: {}]
  %s4 = sld [smem:[#allocation0]]
  $region18: #{tpu_custom_call.1} parent=0
    _
  %s6 = ssub.s32 1, %s4
  %s7 = scalar_select 0, %s6, %s4
  %8 = sst [smem:[#allocation3]] %s0
  $region1: #{tpu_custom_call.1} parent=0
    #allocation4 [shape = 'u8[1024]{0}', space=vmem, size = 0x400, scoped, tag = 'output window, operand 0, single buffered']
    #allocation5 [shape = 's32[1]{0}', space=sflag, size = 0x4, scoped, tag = 'scoped memory for tpu_custom_call.1']
    %9 = vsyncpa [#allocation5], 0
    // Predicated region
    $region2: #{tpu_custom_call.1} parent=1 // pred_check
      _
    $region3: #{tpu_custom_call.1} parent=1 // pred_check_branch
      %11 = sbr.rel (0) target = $region5
    $region4: #{tpu_custom_call.1} parent=1 // pred_region
      _
    $region5: #{tpu_custom_call.1} parent=1 // pred_fallthru
      _
    // Predicated region
    $region6: #{tpu_custom_call.1} parent=1 // pred_check
      _
    $region7: #{tpu_custom_call.1} parent=1 // pred_check_branch
      %13 = sbr.rel (0) target = $region9
    $region8: #{tpu_custom_call.1} parent=1 // pred_region
      _
    $region9: #{tpu_custom_call.1} parent=1 // pred_fallthru
      _
    %s14 = sadd.s32 0, 0
    %s15 = smul.u32 %s14, 256
    %s16 = sld [smem:[#allocation3]]
    %v17 = vlaneseq
    %v18 = vshrl.u32 %v17, 7
    %v19 = vlaneseq
    %v20 = vand.u32 %v19, 127
    %v21 = vmul.u32 %v18, 128
    %v22 = vadd.s32 %v21, %v20
    %v23 = vstv %s15
    %v24 = vadd.s32 %v22, %v23
    %v25 = vmul.u32 %v24, 2654435761
    %v26 = vstv %s16
    %v27 = vadd.s32 %v25, %v26
    %v28 = vshrl.u32 %v27, 16
    %v29 = vxor.u32 %v27, %v28
    %v30 = vmul.u32 %v29, 2146121005
    %v31 = vshrl.u32 %v30, 15
    %v32 = vxor.u32 %v30, %v31
    %v33 = vmul.u32 %v32, 2221713035
    %v34 = vshrl.u32 %v33, 16
    %v35 = vxor.u32 %v33, %v34
    %v36 = vxor.u32 %v35, 1759714724
    %v37 = vshrl.u32 %v36, 16
    %v38 = vxor.u32 %v36, %v37
    %v39 = vmul.u32 %v38, 2146121005
    %v40 = vshrl.u32 %v39, 15
    %v41 = vxor.u32 %v39, %v40
    %v42 = vmul.u32 %v41, 2221713035
    %v43 = vshrl.u32 %v42, 16
    %v44 = vxor.u32 %v42, %v43
    %v45 = vshrl.u32 %v35, 9
    %v46 = vcvt.s32.f32 %v45
    %v47 = vadd.f32 %v46, 0.5
    %v48 = vmul.f32 %v47, 1.1920929e-07
    %v49 = vshrl.u32 %v44, 9
    %v50 = vcvt.s32.f32 %v49
    %v51 = vadd.f32 %v50, 0.5
    %v52 = vmul.f32 %v51, 1.1920929e-07
    %v53 = vlog2.pop %v48
    %v54 = vmul.f32 %v53, 0.6931472
    %v55 = vmul.f32 %v54, -2.0
    %v56 = vrsqrt.pop %v55
    %v57 = vmul.f32 %v55, %v56
    %vm58 = vcmp.eq.f32.partialorder %v55, inf
    %v59 = vsel %vm58, %v55, %v57
    %vm60 = vcmp.eq.f32.partialorder %v55, 0.0
    %v61 = vand.u32 %v55, 2147483648
    %v62 = vsel %vm60, %v61, %v59
    %v63 = vmul.f32 %v52, 6.2831855
    %v64 = vand.u32 2147483647, %v63
    %vm65 = vcmp.le.f32.partialorder %v64, 0.7853982
    %vm66 = vcmp.lt.s32.totalorder %v63, 0
    %v67 = vand.u32 %v63, 2139095040
    %v68 = vshrl.u32 %v67, 23
    %v69 = vsub.s32 %v68, 127
    %v70 = vand.u32 2147483647, %v63
    %v71 = vand.u32 %v70, 8388607
    %v72 = vor.u32 %v71, 8388608
    %v73 = vsub.s32 0, %v72
    %v74 = vadd.s32 %v69, 1
    %vm75 = vcmp.gt.s32.totalorder %v74, 0
    %v76 = vsel %vm75, %v74, 0
    %v77 = vshrl.u32 %v76, 5
    %v78 = vand.u32 %v76, 31
    %v79 = vsub.s32 32, %v78
    %v80 = vshrl.u32 683565275, %v79
    %v81 = vshll.u32 683565275, %v78
    %v82 = vshrl.u32 2475754826, %v79
    %v83 = vor.u32 %v81, %v82
    %v84 = vshll.u32 2475754826, %v78
    %v85 = vshrl.u32 2131351028, %v79
    %v86 = vor.u32 %v84, %v85
    %v87 = vshll.u32 2131351028, %v78
    %v88 = vshrl.u32 2102212464, %v79
    %v89 = vor.u32 %v87, %v88
    %v90 = vshll.u32 2102212464, %v78
    %v91 = vshrl.u32 920167782, %v79
    %v92 = vor.u32 %v90, %v91
    %v93 = vshll.u32 920167782, %v78
    %v94 = vshrl.u32 1326507024, %v79
    %v95 = vor.u32 %v93, %v94
    %vm96 = vcmp.lt.s32.totalorder %v77, 1
    %vm97 = vcmp.lt.s32.totalorder %v77, 2
    %vm98 = vcmp.lt.s32.totalorder %v77, 3
    %vm99 = vcmp.lt.s32.totalorder %v77, 4
    %v100 = vsel %vm96, %v80, %v83
    %v101 = vsel %vm99, %v89, 2102212464
    %v102 = vsel %vm98, %v86, %v101
    %v103 = vsel %vm97, %v100, %v102
    %v104 = vsel %vm96, %v83, %v86
    %v105 = vsel %vm99, %v92, 920167782
    %v106 = vsel %vm98, %v89, %v105
    %v107 = vsel %vm97, %v104, %v106
    %v108 = vsel %vm96, %v86, %v89
    %v109 = vsel %vm99, %v95, 1326507024
    %v110 = vsel %vm98, %v92, %v109
    %v111 = vsel %vm97, %v108, %v110
    %v112 = vshll.u32 %v72, 8
    %v113 = vmul.u32.u64.compose %v112, %v111
    %v114 = vextract.low.u32 %v113
    %v115 = vextract.high.u32 %v113
    %v116 = vmul.u32.u64.compose %v112, %v107
    %v117 = vextract.low.u32 %v116
    %v118 = vextract.high.u32 %v116
    %v119 = vmul.u32 %v112, %v103
    %v120 = vadd.s32 %v115, %v117
    %vm121 = vc.u32 %v115, %v117
    %v122 = vadd.s32 %v118, 1
    %v123 = vsel %vm121, %v122, %v118
    %v124 = vadd.s32 %v119, %v123
    %v125 = vadd.s32 %v124, 536870912
    %v126 = vshrl.u32 %v125, 30
    %v127 = vshll.u32 %v126, 30
    %v128 = vsub.s32 %v124, %v127
    %vm129 = vcmp.lt.s32.totalorder %v128, 0
    %v130 = vsub.s32 0, %v128
    %v131 = vsel %vm129, %v130, %v128
    %v132 = vclz %v131
    %v133 = vsub.s32 %v132, 2
    %vm134 = vcmp.gt.s32.totalorder 0, %v133
    %v135 = vsel %vm134, 0, %v133
    %v136 = vsub.s32 32, %v135
    %v137 = vshll.u32 %v128, %v135
    %v138 = vshrl.u32 %v120, %v136
    %v139 = vor.u32 %v137, %v138
    %v140 = vsub.s32 4294967266, %v135
    %v141 = vadd.s32 %v140, 127
    %v142 = vshll.u32 %v141, 23
    %v143 = vor.u32 4788187, %v142
    %v144 = vand.u32 2147483647, %v143
    %v146 = vcvt.s32.f32 %v139
    %v147 = vmul.f32 %v146, %v144
    %v148 = vxor.u32 %v147, 2147483648
    %v149 = vsel %vm66, %v148, %v147
    %v150 = vsub.s32 4, %v126
    %v151 = vsel %vm66, %v150, %v126
    %v152 = vsel %vm65, %v63, %v149
    %v153 = vsel %vm65, 0, %v151
    %v154 = vcosq.f32.pop %v152
    %v155 = vsinq.f32.pop %v152
    %vm156 = vweird.f32 %v63
    %v157 = vand.u32 %v153, 3
    %vm158 = vcmp.lt.s32.totalorder %v157, 2
    %vm159 = vcmp.eq.s32.totalorder %v157, 0
    %v160 = vxor.u32 %v155, 2147483648
    %v161 = vsel %vm159, %v154, %v160
    %vm162 = vcmp.eq.s32.totalorder %v157, 2
    %v163 = vxor.u32 %v154, 2147483648
    %v164 = vsel %vm162, %v163, %v155
    %v165 = vsel %vm158, %v161, %v164
    %v166 = vsel %vm156, nan, %v165
    %v167 = vmul.f32 %v62, %v166
    %v168 = vld [vmem:[%s2] sm:$0x3]
    %v169 = vld [vmem:[%s1] sm:$0x3]
    %171 = vset.pattern.permute.xlu0 0
    %172 = vperm.xlu0 %171, %v169
    %v173 = vpop.permute.xlu0 %172
    %v175 = vmul.f32 %v167, %v173
    %v176 = vadd.f32 %v168, %v175
    %177 = vst [vmem:[#allocation4] sm:$0x3] %v176
    // Predicated region
    $region10: #{tpu_custom_call.1} parent=1 // pred_check
      _
    $region11: #{tpu_custom_call.1} parent=1 // pred_check_branch
      %179 = sbr.rel (0) target = $region13
    $region12: #{tpu_custom_call.1} parent=1 // pred_region
      %s181 = ssub.s32 32, 32
      %182 = vsyncadd [#allocation5], %s181
      %s184 = sshll.u32 [#allocation4], 4
      %s185 = int_to_ptr.vmem [resolvable:$true] %s184
      %187 = dma.vmem_to_hbm [thread:$0]  %s185, 32, %s3, [#allocation5]
    $region13: #{tpu_custom_call.1} parent=1 // pred_fallthru
      _
    // Predicated region
    $region14: #{tpu_custom_call.1} parent=1 // pred_check
      _
    $region15: #{tpu_custom_call.1} parent=1 // pred_check_branch
      %189 = sbr.rel (0) target = $region17
    $region16: #{tpu_custom_call.1} parent=1 // pred_region
      %190 = dma.done [#allocation5], 32
    $region17: #{tpu_custom_call.1} parent=1 // pred_fallthru
      _
    %191 = vsyncpa [#allocation5], 1

</llo_original>
